<compile_context>
chip_gen: v6e
topology: v6e:2x2x1
jax: 0.10.0
libtpu: 0.0.40
codegen_flags: <defaults>
</compile_context>

<pallas_src>
import functools

import jax
import jax.numpy as jnp
from jax.experimental import pallas as pl
from jax.experimental.pallas import tpu as pltpu


def _round_up(x, m):
    return (x + m - 1) // m * m


def _conv1d_kernel(x_ref, w_ref, b_ref, o_ref, acc_ref):
    # x_ref: (tm, tk), w_ref: (tk, tn), b_ref: (1, tn), o_ref: (tm, tn)
    # acc_ref: (tm, tn) f32 scratch, resident across the K grid axis.
    k = pl.program_id(2)

    @pl.when(k == 0)
    def _():
        acc_ref[...] = jnp.zeros_like(acc_ref)

    acc_ref[...] += jnp.dot(
        x_ref[...], w_ref[...], preferred_element_type=jnp.float32
    )

    @pl.when(k == pl.num_programs(2) - 1)
    def _():
        o_ref[...] = (acc_ref[...] + b_ref[...].astype(jnp.float32)).astype(
            o_ref.dtype
        )


@functools.partial(jax.jit, static_argnames=("tm", "tn", "tk", "compute_dtype"))
def conv1d_forward(x, w, b, *, tm=256, tn=512, tk=512, compute_dtype=None):
    """Equivalent of Conv1D.forward with rf == 1.

    x: (..., nx)
    w: (nx, nf)
    b: (nf,)
    returns: (..., nf), same dtype as x.
    """
    nx, nf = w.shape
    lead_shape = x.shape[:-1]
    out_dtype = x.dtype

    x2d = x.reshape(-1, nx)
    M = x2d.shape[0]

    # ---- effective tile sizes (clamped for small problems) ----
    tm_eff = min(tm, _round_up(M, 8))            # multiple of 8
    tn_eff = min(tn, _round_up(nf, 128))         # multiple of 128 (lane-dense)
    if nx <= tk:
        tk_eff = nx                              # full-K, single reduction step
    else:
        tk_eff = tk                              # tile K (multiple of 128)

    M_pad = _round_up(M, tm_eff)
    nf_pad = _round_up(nf, tn_eff)
    nx_pad = _round_up(nx, tk_eff)

    # ---- optional low-precision MXU operands (f32 accumulation kept) ----
    if compute_dtype is not None:
        x2d = x2d.astype(compute_dtype)
        w = w.astype(compute_dtype)

    # ---- zero padding to tile multiples (exact for the matmul) ----
    if (M_pad, nx_pad) != (M, nx):
        x2d = jnp.pad(x2d, ((0, M_pad - M), (0, nx_pad - nx)))
    if (nx_pad, nf_pad) != (nx, nf):
        w = jnp.pad(w, ((0, nx_pad - nx), (0, nf_pad - nf)))
    b2d = b.reshape(1, nf).astype(jnp.float32)
    if nf_pad != nf:
        b2d = jnp.pad(b2d, ((0, 0), (0, nf_pad - nf)))

    grid = (M_pad // tm_eff, nf_pad // tn_eff, nx_pad // tk_eff)

    itemsize = lambda a: jnp.dtype(a.dtype).itemsize
    cost = pl.CostEstimate(
        flops=2 * M * nx * nf,
        transcendentals=0,
        bytes_accessed=(
            x2d.size * itemsize(x2d)
            + w.size * itemsize(w)
            + b2d.size * itemsize(b2d)
            + M_pad * nf_pad * jnp.dtype(out_dtype).itemsize
        ),
    )

    out = pl.pallas_call(
        _conv1d_kernel,
        out_shape=jax.ShapeDtypeStruct((M_pad, nf_pad), out_dtype),
        grid_spec=pltpu.PrefetchScalarGridSpec(
            num_scalar_prefetch=0,
            grid=grid,
            in_specs=[
                pl.BlockSpec((tm_eff, tk_eff), lambda i, j, k: (i, k)),  # x tile
                pl.BlockSpec((tk_eff, tn_eff), lambda i, j, k: (k, j)),  # w tile
                pl.BlockSpec((1, tn_eff), lambda i, j, k: (0, j)),       # bias
            ],
            out_specs=pl.BlockSpec((tm_eff, tn_eff), lambda i, j, k: (i, j)),
            scratch_shapes=[pltpu.VMEM((tm_eff, tn_eff), jnp.float32)],
        ),
        compiler_params=pltpu.CompilerParams(
            dimension_semantics=("parallel", "parallel", "arbitrary"),
        ),
        cost_estimate=cost,
    )(x2d, w, b2d)

    out = out[:M, :nf]
    return out.reshape(*lead_shape, nf)


if __name__ == "__main__":
    # Module config: Conv1D(nf, rf=1, nx)
    nx = 32   # input feature dim
    nf = 64   # output feature dim
    batch, seq = 2, 8

    key = jax.random.PRNGKey(0)
    kx, kw, kx2 = jax.random.split(key, 3)

    # Deterministic parameter init matching nn.init.normal_(w, std=0.02), b = 0.
    w = 0.02 * jax.random.normal(kw, (nx, nf), dtype=jnp.float32)
    b = jnp.zeros((nf,), dtype=jnp.float32)

    # --- case 1: standard (batch, seq, nx) input, f32 operands ---
    x = jax.random.normal(kx, (batch, seq, nx), dtype=jnp.float32)
    y = jax.block_until_ready(conv1d_forward(x, w, b))
    y_ref = (x.reshape(-1, nx) @ w + b).reshape(batch, seq, nf)
    assert y.shape == (batch, seq, nf)
    assert jnp.allclose(y, y_ref, atol=1e-5, rtol=1e-5)

    # --- case 2: leading dims not divisible by the tile (padding path) ---
    x_odd = jax.random.normal(kx2, (3, 5, nx), dtype=jnp.float32)
    y_odd = jax.block_until_ready(conv1d_forward(x_odd, w, b))
    y_odd_ref = (x_odd.reshape(-1, nx) @ w + b).reshape(3, 5, nf)
    assert jnp.allclose(y_odd, y_odd_ref, atol=1e-5, rtol=1e-5)

    # --- case 3: bf16 MXU operands with f32 accumulation (looser tolerance) ---
    y_bf16 = jax.block_until_ready(
        conv1d_forward(x, w, b, compute_dtype=jnp.bfloat16)
    )
    assert y_bf16.dtype == x.dtype
    assert jnp.allclose(y_bf16, y_ref, atol=1e-2, rtol=2e-2)

    print("KERNEL_OK")
</pallas_src>

<mosaic_0001>
module attributes {stable_mosaic.version = 11 : i64} {
  func.func @_conv1d_kernel(%arg0: i32, %arg1: i32, %arg2: i32, %arg3: memref<16x32xf32, #tpu.memory_space<vmem>>, %arg4: memref<32x128xf32, #tpu.memory_space<vmem>>, %arg5: memref<1x128xf32, #tpu.memory_space<vmem>>, %arg6: memref<16x128xf32, #tpu.memory_space<vmem>>, %arg7: memref<16x128xf32, #tpu.memory_space<vmem>>) attributes {dimension_semantics = [#tpu.dimension_semantics<parallel>, #tpu.dimension_semantics<parallel>, #tpu.dimension_semantics<arbitrary>], iteration_bounds = array<i64: 1, 1, 1>, scalar_prefetch = 0 : i64, scratch_operands = 1 : i64, tpu.core_type = #tpu.core_type<tc>, window_params = [{transform_indices = @transform_0, window_bounds = array<i64: 16, 32>}, {transform_indices = @transform_1, window_bounds = array<i64: 32, 128>}, {transform_indices = @transform_2, window_bounds = array<i64: 1, 128>}, {transform_indices = @transform_3, window_bounds = array<i64: 16, 128>}]} {
    %c0_i32 = arith.constant 0 : i32
    %0 = arith.cmpi eq, %arg2, %c0_i32 : i32
    %1 = arith.extui %0 : i1 to i32
    %c0_i32_0 = arith.constant 0 : i32
    %2 = arith.cmpi ne, %1, %c0_i32_0 : i32
    scf.if %2 {
      %cst_10 = arith.constant 0.000000e+00 : f32
      %12 = vector.broadcast %cst_10 : f32 to vector<16x128xf32>
      %c0_11 = arith.constant 0 : index
      %c0_12 = arith.constant 0 : index
      %13 = vector.load %arg7[%c0_11, %c0_12] : memref<16x128xf32, #tpu.memory_space<vmem>>, vector<16x128xf32>
      tpu.vector_store %arg7[%c0_11, %c0_12], %12 {strides = array<i32>} : memref<16x128xf32, #tpu.memory_space<vmem>>, vector<16x128xf32>,
    } else {
    }
    %c0 = arith.constant 0 : index
    %c0_1 = arith.constant 0 : index
    %3 = vector.load %arg7[%c0, %c0_1] : memref<16x128xf32, #tpu.memory_space<vmem>>, vector<16x128xf32>
    %c0_2 = arith.constant 0 : index
    %c0_3 = arith.constant 0 : index
    %4 = vector.load %arg3[%c0_2, %c0_3] : memref<16x32xf32, #tpu.memory_space<vmem>>, vector<16x32xf32>
    %c0_4 = arith.constant 0 : index
    %c0_5 = arith.constant 0 : index
    %5 = vector.load %arg4[%c0_4, %c0_5] : memref<32x128xf32, #tpu.memory_space<vmem>>, vector<32x128xf32>
    %cst = arith.constant dense<0.000000e+00> : vector<16x128xf32>
    %6 = tpu.matmul %4, %5, %cst {dimension_numbers = #tpu.dot_dimension_numbers<[1], [0], [0], [1], [0, 0, 1, 1], [], []>} : vector<16x32xf32>, vector<32x128xf32>, vector<16x128xf32> -> vector<16x128xf32>
    %7 = arith.addf %3, %6 : vector<16x128xf32>
    %c0_6 = arith.constant 0 : index
    %c0_7 = arith.constant 0 : index
    %8 = vector.load %arg7[%c0_6, %c0_7] : memref<16x128xf32, #tpu.memory_space<vmem>>, vector<16x128xf32>
    tpu.vector_store %arg7[%c0_6, %c0_7], %7 {strides = array<i32>} : memref<16x128xf32, #tpu.memory_space<vmem>>, vector<16x128xf32>,
    %c0_i32_8 = arith.constant 0 : i32
    %9 = arith.cmpi eq, %arg2, %c0_i32_8 : i32
    %10 = arith.extui %9 : i1 to i32
    %c0_i32_9 = arith.constant 0 : i32
    %11 = arith.cmpi ne, %10, %c0_i32_9 : i32
    scf.if %11 {
      %c0_10 = arith.constant 0 : index
      %c0_11 = arith.constant 0 : index
      %12 = vector.load %arg7[%c0_10, %c0_11] : memref<16x128xf32, #tpu.memory_space<vmem>>, vector<16x128xf32>
      %c0_12 = arith.constant 0 : index
      %c0_13 = arith.constant 0 : index
      %13 = vector.load %arg5[%c0_12, %c0_13] : memref<1x128xf32, #tpu.memory_space<vmem>>, vector<1x128xf32>
      %14 = vector.broadcast %13 : vector<1x128xf32> to vector<16x128xf32>
      %15 = arith.addf %12, %14 : vector<16x128xf32>
      %c0_14 = arith.constant 0 : index
      %c0_15 = arith.constant 0 : index
      %16 = vector.load %arg6[%c0_14, %c0_15] : memref<16x128xf32, #tpu.memory_space<vmem>>, vector<16x128xf32>
      tpu.vector_store %arg6[%c0_14, %c0_15], %15 {strides = array<i32>} : memref<16x128xf32, #tpu.memory_space<vmem>>, vector<16x128xf32>,
    } else {
    }
    return
  }
  func.func @transform_0(%arg0: i32, %arg1: i32, %arg2: i32) -> (i32, i32) {
    %c0_i32 = arith.constant 0 : i32
    return %arg0, %arg2 : i32, i32
  }
  func.func @transform_1(%arg0: i32, %arg1: i32, %arg2: i32) -> (i32, i32) {
    %c0_i32 = arith.constant 0 : i32
    return %arg2, %arg1 : i32, i32
  }
  func.func @transform_2(%arg0: i32, %arg1: i32, %arg2: i32) -> (i32, i32) {
    %c0_i32 = arith.constant 0 : i32
    %c0_i32_0 = arith.constant 0 : i32
    return %c0_i32, %arg1 : i32, i32
  }
  func.func @transform_3(%arg0: i32, %arg1: i32, %arg2: i32) -> (i32, i32) {
    %c0_i32 = arith.constant 0 : i32
    return %arg0, %arg1 : i32, i32
  }
}

</mosaic_0001>

<llo_original>
// kernel: conv1d_forward.1
$region0: #{conv1d_forward.1}
  #allocation0 [shape = 'u32[]', space=smem, size = 0x4, offset = 0x4, fixed_abs, tag = 'smem constant byte address 0x4 - core index']
  #allocation1 [shape = 'u32[144,128]{1,0:T(1,128)}', space=vmem, size = 0x12000, scoped, tag = 'internal scratch']
  #allocation2 [shape = 'f32[16,128]{1,0:T(8,128)}', space=vmem, size = 0x2000, scoped, tag = 'scratch operand']
  %s0 = inlined_call_operand.vmem [shape: f32[16,32], index: 0, kind: input, shape index: {}]
  %s1 = inlined_call_operand.vmem [shape: f32[32,128], index: 1, kind: input, shape index: {}]
  %s2 = inlined_call_operand.vmem [shape: f32[1,128], index: 2, kind: input, shape index: {}]
  %s3 = inlined_call_operand.vmem [shape: f32[16,128], index: 3, kind: output, shape index: {}]
  %s4 = sld [smem:[#allocation0]]
  $region30: #{conv1d_forward.1} parent=0
    _
  %s6 = ssub.s32 1, %s4
  %s7 = scalar_select 0, %s6, %s4
  // Predicated region
  $region2: #{conv1d_forward.1} parent=0 // pred_check
    _
  $region3: #{conv1d_forward.1} parent=0 // pred_check_branch
    %9 = sbr.rel (0) target = $region5
  $region4: #{conv1d_forward.1} parent=0 // pred_region
    _
  $region5: #{conv1d_forward.1} parent=0 // pred_fallthru
    _
  // Predicated region
  $region6: #{conv1d_forward.1} parent=0 // pred_check
    _
  $region7: #{conv1d_forward.1} parent=0 // pred_check_branch
    %11 = sbr.rel (0) target = $region9
  $region8: #{conv1d_forward.1} parent=0 // pred_region
    _
  $region9: #{conv1d_forward.1} parent=0 // pred_fallthru
    _
  // Predicated region
  $region10: #{conv1d_forward.1} parent=0 // pred_check
    _
  $region11: #{conv1d_forward.1} parent=0 // pred_check_branch
    %13 = sbr.rel (0) target = $region13
  $region12: #{conv1d_forward.1} parent=0 // pred_region
    _
  $region13: #{conv1d_forward.1} parent=0 // pred_fallthru
    _
  %p14 = scmp.eq.s32.totalorder 0, 0
  // Predicated region
  $region14: #{conv1d_forward.1} parent=0 // pred_check
    %p15 = pneg %p14
  $region15: #{conv1d_forward.1} parent=0 // pred_check_branch
    %17 = sbr.rel (%p15) target = $region17
  $region16: #{conv1d_forward.1} parent=0 // pred_region
    %18 = vst [vmem:[#allocation2] sm:$0xff] 0.0
    %19 = vst [vmem:[#allocation2 + $0x8] sm:$0xff] 0.0
  $region17: #{conv1d_forward.1} parent=0 // pred_fallthru
    _
  %v20 = vld [vmem:[#allocation2] sm:$0xff]
  %v21 = vld [vmem:[#allocation2 + $0x8] sm:$0xff]
  %v22 = vld [vmem:[%s0] sm:$0xff]
  %v23 = vld [vmem:[%s0 + $0x8] sm:$0xff]
  %v24 = vld [vmem:[%s1] sm:$0xff]
  %v25 = vld [vmem:[%s1 + $0x8] sm:$0xff]
  %v26 = vld [vmem:[%s1 + $0x10] sm:$0xff]
  %v27 = vld [vmem:[%s1 + $0x18] sm:$0xff]
  %vm28 = vcmask 261120
  %v30 = vsel %vm28, %v22, 0
  %v33 = vsel %vm28, %v23, 0
  %35 = vmatprep.subr.mxu0 0.0
  %36 = vmatpush1.msra.mxu0 0.0
  %37 = vmatprep.subr.mxu0 0.0
  %38 = vmatpush1.msra.mxu0 0.0
  %39 = vmatprep.subr.mxu0 0.0
  %40 = vmatpush1.msra.mxu0 0.0
  %41 = vmatprep.subr.mxu0 0.0
  %42 = vmatpush1.msra.mxu0 0.0
  %43 = vmatprep.subr.mxu0 0.0
  %44 = vmatpush1.msra.mxu0 0.0
  %45 = vmatprep.subr.mxu0 0.0
  %46 = vmatpush1.msra.mxu0 0.0
  %47 = vmatprep.subr.mxu0 0.0
  %48 = vmatpush1.msra.mxu0 0.0
  %49 = vmatprep.subr.mxu0 0.0
  %50 = vmatpush1.msra.mxu0 0.0
  %51 = vmatprep.subr.mxu0 0.0
  %52 = vmatpush1.msra.mxu0 0.0
  %53 = vmatprep.subr.mxu0 0.0
  %54 = vmatpush1.msra.mxu0 0.0
  %55 = vmatprep.subr.mxu0 0.0
  %56 = vmatpush1.msra.mxu0 0.0
  %57 = vmatprep.subr.mxu0 0.0
  %58 = vmatpush1.msra.mxu0 0.0
  %59 = vmatprep.subr.mxu0 0.0
  %60 = vmatpush1.msra.mxu0 %v27
  %61 = vmatprep.subr.mxu0 0.0
  %62 = vmatpush1.msra.mxu0 %v26
  %63 = vmatprep.subr.mxu0 0.0
  %64 = vmatpush1.msra.mxu0 %v25
  %65 = vmatprep.subr.mxu0 0.0
  %66 = vmatpush1.msra.mxu0 %v24
  %67 = vmatprep.subr.mxu0 0.0
  %68 = vmatpush2.msra.mxu0 0.0
  %69 = vmatprep.subr.mxu0 0.0
  %70 = vmatpush2.msra.mxu0 0.0
  %71 = vmatprep.subr.mxu0 0.0
  %72 = vmatpush2.msra.mxu0 0.0
  %73 = vmatprep.subr.mxu0 0.0
  %74 = vmatpush2.msra.mxu0 0.0
  %75 = vmatprep.subr.mxu0 0.0
  %76 = vmatpush2.msra.mxu0 0.0
  %77 = vmatprep.subr.mxu0 0.0
  %78 = vmatpush2.msra.mxu0 0.0
  %79 = vmatprep.subr.mxu0 0.0
  %80 = vmatpush2.msra.mxu0 0.0
  %81 = vmatprep.subr.mxu0 0.0
  %82 = vmatpush2.msra.mxu0 0.0
  %83 = vmatprep.subr.mxu0 0.0
  %84 = vmatpush2.msra.mxu0 0.0
  %85 = vmatprep.subr.mxu0 0.0
  %86 = vmatpush2.msra.mxu0 0.0
  %87 = vmatprep.subr.mxu0 0.0
  %88 = vmatpush2.msra.mxu0 0.0
  %89 = vmatprep.subr.mxu0 0.0
  %90 = vmatpush2.msra.mxu0 0.0
  %91 = vmatprep.subr.mxu0 0.0
  %92 = vmatpush2.msra.mxu0 0.0
  %93 = vmatprep.subr.mxu0 0.0
  %94 = vmatpush2.msra.mxu0 0.0
  %95 = vmatprep.subr.mxu0 0.0
  %96 = vmatpush2.msra.mxu0 0.0
  %97 = vmatprep.subr.mxu0 0.0
  %98 = vmatpush2.msra.mxu0 0.0
  %99 = vmatprep.mubr.f32.mxu0 0.0
  %100 = vmatmul.mubr.f32.gmra.mxu0 %v30
  %v101 = vpop.f32.mrf.mxu0
  %v102 = vadd.f32 0.0, %v101
  %v103 = vpop.f32.mrf.mxu0
  %104 = vmatprep.mubr.f32.mxu0 0.0
  %105 = vmatmul.mubr.f32.gmra.mxu0 %v33
  %v106 = vpop.f32.mrf.mxu0
  %v107 = vadd.f32 0.0, %v106
  %v108 = vpop.f32.mrf.mxu0
  %109 = vdwg.mxu0
  %v110 = vadd.f32 %v20, %v102
  %v111 = vadd.f32 %v21, %v107
  %112 = vst [vmem:[#allocation2] sm:$0xff] %v110
  %113 = vst [vmem:[#allocation2 + $0x8] sm:$0xff] %v111
  // Predicated region
  $region18: #{conv1d_forward.1} parent=0 // pred_check
    %p114 = pneg %p14
  $region19: #{conv1d_forward.1} parent=0 // pred_check_branch
    %116 = sbr.rel (%p114) target = $region21
  $region20: #{conv1d_forward.1} parent=0 // pred_region
    %v117 = vld [vmem:[#allocation2] sm:$0xff]
    %v118 = vld [vmem:[#allocation2 + $0x8] sm:$0xff]
    %v119 = vld [vmem:[%s2] sm:$0x1]
    %v121 = vlaneseq
    %v122 = vshrl.u32 %v121, 7
    %v123 = vsub.s32 0, %v122
    %v124 = vrot.slane %v119, %v123
    %v126 = vadd.f32 %v117, %v124
    %v127 = vadd.f32 %v118, %v124
    %128 = vst [vmem:[%s3] sm:$0xff] %v126
    %129 = vst [vmem:[%s3 + $0x8] sm:$0xff] %v127
  $region21: #{conv1d_forward.1} parent=0 // pred_fallthru
    _
  // Predicated region
  $region22: #{conv1d_forward.1} parent=0 // pred_check
    _
  $region23: #{conv1d_forward.1} parent=0 // pred_check_branch
    %131 = sbr.rel (0) target = $region25
  $region24: #{conv1d_forward.1} parent=0 // pred_region
    _
  $region25: #{conv1d_forward.1} parent=0 // pred_fallthru
    _
  // Predicated region
  $region26: #{conv1d_forward.1} parent=0 // pred_check
    _
  $region27: #{conv1d_forward.1} parent=0 // pred_check_branch
    %133 = sbr.rel (0) target = $region29
  $region28: #{conv1d_forward.1} parent=0 // pred_region
    _
  $region29: #{conv1d_forward.1} parent=0 // pred_fallthru
    _

</llo_original>
